<compile_context>
chip_gen: v5e
topology: v5e:2x2
jax: 0.10.0
libtpu: 0.0.40
codegen_flags: <defaults>
</compile_context>

<pallas_src>
import jax
import jax.numpy as jnp
from jax.experimental import pallas as pl
from jax.experimental.pallas import tpu as pltpu

_BN_EPS = 1e-5


def _pick_l_tile(L):
    """Largest lane-friendly tile along L (full L when small, 128-multiples otherwise)."""
    if L <= 512:
        return L
    for t in (512, 384, 256, 128):
        if L % t == 0:
            return t
    return L


def _make_layer_kernel(n_groups, ksize, l_tile, n_l_tiles):
    P = ksize // 2

    def kernel(*refs):
        group_refs = refs[:n_groups]
        scale_ref, shift_ref, w_ref, b_ref = refs[n_groups:n_groups + 4]
        out_ref = refs[n_groups + 4]

        # Assemble the layer input (all previously produced channel groups) for this
        # batch element; channels on sublanes, L on lanes.
        x = jnp.concatenate([r[0] for r in group_refs], axis=0)           # (C, L)

        # BatchNorm (precomputed batch stats folded into per-channel scale/shift) + ReLU.
        xr = jnp.maximum(x * scale_ref[...] + shift_ref[...], 0.0)        # (C, L)

        # Zero padding of the conv input (post-ReLU), as Conv1d(padding=K//2) does.
        C = x.shape[0]
        if P > 0:
            zpad = jnp.zeros((C, P), jnp.float32)
            xp = jnp.concatenate([zpad, xr, zpad], axis=1)                # (C, L + 2P)
        else:
            xp = xr

        # im2col for this L tile: K lane-shifted views stacked on the sublane axis,
        # then ONE MXU matmul with a K*C-deep contraction dimension.
        taps = []
        for k in range(ksize):
            if n_l_tiles == 1:
                taps.append(xp[:, k:k + l_tile])                          # static slice
            else:
                l0 = pl.multiple_of(pl.program_id(1) * l_tile, l_tile)
                taps.append(jax.lax.dynamic_slice_in_dim(xp, l0 + k, l_tile, axis=1))
        patch = jnp.concatenate(taps, axis=0)                             # (K*C, TL)

        # NOTE: on v6e/v7x the matmul operands could be cast to bf16 (keeping
        # preferred_element_type=f32); kept in f32 here so the numerical self-check
        # against the f32 reference holds tightly (and f32 VPU math suits v5e).
        conv = jnp.dot(w_ref[...], patch, preferred_element_type=jnp.float32)
        out_ref[0] = conv + b_ref[...]                                    # (G, TL), lane-dense

    return kernel


def _dense_layer_conv(groups, scale, shift, w2, bias, ksize):
    """One layer: affine-BN + ReLU + Conv1d. Returns only the new (N, G, L) channels."""
    N, _, L = groups[0].shape
    G = w2.shape[0]
    TL = _pick_l_tile(L)
    n_lt = L // TL

    in_specs = [pl.BlockSpec((1, g.shape[1], L), lambda n, lt: (n, 0, 0)) for g in groups]
    in_specs += [
        pl.BlockSpec(scale.shape, lambda n, lt: (0, 0)),
        pl.BlockSpec(shift.shape, lambda n, lt: (0, 0)),
        pl.BlockSpec(w2.shape, lambda n, lt: (0, 0)),
        pl.BlockSpec(bias.shape, lambda n, lt: (0, 0)),
    ]
    out_spec = pl.BlockSpec((1, G, TL), lambda n, lt: (n, 0, lt))

    return pl.pallas_call(
        _make_layer_kernel(len(groups), ksize, TL, n_lt),
        out_shape=jax.ShapeDtypeStruct((N, G, L), jnp.float32),
        grid=(N, n_lt),
        in_specs=in_specs,
        out_specs=out_spec,
        compiler_params=pltpu.CompilerParams(
            dimension_semantics=("parallel", "parallel")),
    )(*groups, scale, shift, w2, bias)


def _channel_stats(y_ncl):
    """Per-channel training-mode (biased) batch statistics over (N, L)."""
    mean = jnp.mean(y_ncl, axis=(0, 2))
    var = jnp.mean(jnp.square(y_ncl - mean[None, :, None]), axis=(0, 2))
    return mean, var


def init_dense_block_params(key, in_channels, growth_rate, n_layers, ksize):
    """Deterministic synthetic parameters (PyTorch-style shapes)."""
    params = []
    c = in_channels
    for _ in range(n_layers):
        k1, k2, k3, k4, key = jax.random.split(key, 5)
        gamma = 1.0 + 0.1 * jax.random.normal(k1, (c,), jnp.float32)
        beta = 0.1 * jax.random.normal(k2, (c,), jnp.float32)
        fan_in = c * ksize
        w = jax.random.normal(k3, (growth_rate, c, ksize), jnp.float32) / jnp.sqrt(fan_in)
        b = 0.1 * jax.random.normal(k4, (growth_rate,), jnp.float32)
        params.append((gamma, beta, w, b))
        c += growth_rate
    return params


def dense_block_pallas(x_ncl, params, ksize):
    """DenseBlock forward. x_ncl: (N, C_in, L) like PyTorch Conv1d. Returns NCL."""
    x = x_ncl.astype(jnp.float32)
    groups = [x]                 # dense feature groups; never re-copied per layer
    m0, v0 = _channel_stats(x)
    means, variances = [m0], [v0]

    for gamma, beta, w, b in params:
        C = gamma.shape[0]
        G, _, K = w.shape
        # Cached batch statistics: prefix channels are bit-identical across layers, so
        # only the newest G channels ever need a fresh reduction (done after the layer).
        mean_all = jnp.concatenate(means)
        var_all = jnp.concatenate(variances)
        scale = gamma * jax.lax.rsqrt(var_all + _BN_EPS)
        shift = beta - mean_all * scale
        # Conv1d weight (G, C, K) -> im2col layout (G, K*C), rows ordered k-major.
        w2 = jnp.transpose(w, (0, 2, 1)).reshape(G, K * C)

        y = _dense_layer_conv(groups, scale.reshape(C, 1), shift.reshape(C, 1),
                              w2, b.reshape(G, 1), ksize)

        m, v = _channel_stats(y)
        groups.append(y)
        means.append(m)
        variances.append(v)

    # Single O(C_total) assembly of the dense output (PyTorch returns the full concat).
    return jnp.concatenate(groups, axis=1)


def dense_block_ref(x_ncl, params, ksize):
    """Pure-JAX reference matching PyTorch forward semantics (NCL layout)."""
    P = ksize // 2
    out = x_ncl.astype(jnp.float32)
    for gamma, beta, w, b in params:
        mean = jnp.mean(out, axis=(0, 2), keepdims=True)
        var = jnp.mean((out - mean) ** 2, axis=(0, 2), keepdims=True)
        xn = (out - mean) / jnp.sqrt(var + _BN_EPS) * gamma[None, :, None] + beta[None, :, None]
        xr = jnp.maximum(xn, 0.0)
        conv = jax.lax.conv_general_dilated(
            xr, w, window_strides=(1,), padding=[(P, P)],
            dimension_numbers=("NCH", "OIH", "NCH"),
        ) + b[None, :, None]
        out = jnp.concatenate([out, conv], axis=1)
    return out


if __name__ == "__main__":
    # Small shapes consistent with the module: Conv1d input (N, C_in, L).
    N, C_in, L = 2, 4, 16
    growth_rate, n_layers, filter_size = 4, 3, 3   # odd filter_size => length-preserving conv

    key = jax.random.PRNGKey(0)
    kx, kp = jax.random.split(key)
    x = jax.random.normal(kx, (N, C_in, L), jnp.float32)
    params = init_dense_block_params(kp, C_in, growth_rate, n_layers, filter_size)

    out = jax.block_until_ready(dense_block_pallas(x, params, filter_size))
    ref = jax.block_until_ready(dense_block_ref(x, params, filter_size))

    assert out.shape == (N, C_in + n_layers * growth_rate, L), out.shape
    max_err = float(jnp.max(jnp.abs(out - ref)))
    assert jnp.allclose(out, ref, rtol=1e-4, atol=1e-4), max_err
    print("KERNEL_OK")
</pallas_src>

<mosaic_0001>
module attributes {stable_mosaic.version = 11 : i64} {
  func.func @kernel(%arg0: i32, %arg1: i32, %arg2: memref<1x4x16xf32, #tpu.memory_space<vmem>>, %arg3: memref<4x1xf32, #tpu.memory_space<vmem>>, %arg4: memref<4x1xf32, #tpu.memory_space<vmem>>, %arg5: memref<4x12xf32, #tpu.memory_space<vmem>>, %arg6: memref<4x1xf32, #tpu.memory_space<vmem>>, %arg7: memref<1x4x16xf32, #tpu.memory_space<vmem>>) attributes {dimension_semantics = [#tpu.dimension_semantics<parallel>, #tpu.dimension_semantics<parallel>], iteration_bounds = array<i64: 2, 1>, scalar_prefetch = 0 : i64, scratch_operands = 0 : i64, tpu.core_type = #tpu.core_type<tc>, window_params = [{transform_indices = @transform_0, window_bounds = array<i64: 1, 4, 16>}, {pipeline_mode = #tpu.pipeline_mode<synchronous>, transform_indices = @transform_1, window_bounds = array<i64: 4, 1>}, {pipeline_mode = #tpu.pipeline_mode<synchronous>, transform_indices = @transform_2, window_bounds = array<i64: 4, 1>}, {pipeline_mode = #tpu.pipeline_mode<synchronous>, transform_indices = @transform_3, window_bounds = array<i64: 4, 12>}, {pipeline_mode = #tpu.pipeline_mode<synchronous>, transform_indices = @transform_4, window_bounds = array<i64: 4, 1>}, {transform_indices = @transform_5, window_bounds = array<i64: 1, 4, 16>}]} {
    %c0 = arith.constant 0 : index
    %c0_0 = arith.constant 0 : index
    %c0_1 = arith.constant 0 : index
    %0 = vector.load %arg2[%c0, %c0_0, %c0_1] : memref<1x4x16xf32, #tpu.memory_space<vmem>>, vector<1x4x16xf32>
    %1 = vector.shape_cast %0 : vector<1x4x16xf32> to vector<4x16xf32>
    %c0_2 = arith.constant 0 : index
    %c0_3 = arith.constant 0 : index
    %2 = vector.load %arg3[%c0_2, %c0_3] : memref<4x1xf32, #tpu.memory_space<vmem>>, vector<4x1xf32>
    %3 = vector.broadcast %2 : vector<4x1xf32> to vector<4x16xf32>
    %4 = arith.mulf %1, %3 : vector<4x16xf32>
    %c0_4 = arith.constant 0 : index
    %c0_5 = arith.constant 0 : index
    %5 = vector.load %arg4[%c0_4, %c0_5] : memref<4x1xf32, #tpu.memory_space<vmem>>, vector<4x1xf32>
    %6 = vector.broadcast %5 : vector<4x1xf32> to vector<4x16xf32>
    %7 = arith.addf %4, %6 : vector<4x16xf32>
    %cst = arith.constant 0.000000e+00 : f32
    %8 = vector.broadcast %cst : f32 to vector<4x16xf32>
    %9 = arith.maximumf %7, %8 : vector<4x16xf32>
    %cst_6 = arith.constant 0.000000e+00 : f32
    %10 = vector.broadcast %cst_6 : f32 to vector<4x1xf32>
    %11 = tpu.concatenate %10, %9, %10 in 1 : vector<4x1xf32>, vector<4x16xf32>, vector<4x1xf32> -> vector<4x18xf32>
    %12 = vector.extract_strided_slice %11 {offsets = [0, 0], sizes = [4, 16], strides = [1, 1]} : vector<4x18xf32> to vector<4x16xf32>
    %13 = vector.extract_strided_slice %11 {offsets = [0, 1], sizes = [4, 16], strides = [1, 1]} : vector<4x18xf32> to vector<4x16xf32>
    %14 = vector.extract_strided_slice %11 {offsets = [0, 2], sizes = [4, 16], strides = [1, 1]} : vector<4x18xf32> to vector<4x16xf32>
    %15 = tpu.concatenate %12, %13, %14 in 0 : vector<4x16xf32>, vector<4x16xf32>, vector<4x16xf32> -> vector<12x16xf32>
    %c0_7 = arith.constant 0 : index
    %c0_8 = arith.constant 0 : index
    %16 = vector.load %arg5[%c0_7, %c0_8] : memref<4x12xf32, #tpu.memory_space<vmem>>, vector<4x12xf32>
    %cst_9 = arith.constant dense<0.000000e+00> : vector<4x16xf32>
    %17 = tpu.matmul %16, %15, %cst_9 {dimension_numbers = #tpu.dot_dimension_numbers<[1], [0], [0], [1], [0, 0, 1, 1], [], []>} : vector<4x12xf32>, vector<12x16xf32>, vector<4x16xf32> -> vector<4x16xf32>
    %c0_10 = arith.constant 0 : index
    %c0_11 = arith.constant 0 : index
    %18 = vector.load %arg6[%c0_10, %c0_11] : memref<4x1xf32, #tpu.memory_space<vmem>>, vector<4x1xf32>
    %19 = vector.broadcast %18 : vector<4x1xf32> to vector<4x16xf32>
    %20 = arith.addf %17, %19 : vector<4x16xf32>
    %c0_12 = arith.constant 0 : index
    %c0_13 = arith.constant 0 : index
    %c0_14 = arith.constant 0 : index
    %21 = vector.load %arg7[%c0_12, %c0_13, %c0_14] : memref<1x4x16xf32, #tpu.memory_space<vmem>>, vector<1x4x16xf32>
    %22 = vector.shape_cast %21 : vector<1x4x16xf32> to vector<4x16xf32>
    %23 = vector.shape_cast %20 : vector<4x16xf32> to vector<1x4x16xf32>
    tpu.vector_store %arg7[%c0_12, %c0_13, %c0_14], %23 {strides = array<i32>} : memref<1x4x16xf32, #tpu.memory_space<vmem>>, vector<1x4x16xf32>,
    return
  }
  func.func @transform_0(%arg0: i32, %arg1: i32) -> (i32, i32, i32) {
    %c0_i32 = arith.constant 0 : i32
    %c0_i32_0 = arith.constant 0 : i32
    %c0_i32_1 = arith.constant 0 : i32
    return %arg0, %c0_i32, %c0_i32_0 : i32, i32, i32
  }
  func.func @transform_1(%arg0: i32, %arg1: i32) -> (i32, i32) {
    %c0_i32 = arith.constant 0 : i32
    %c0_i32_0 = arith.constant 0 : i32
    %c0_i32_1 = arith.constant 0 : i32
    return %c0_i32, %c0_i32_0 : i32, i32
  }
  func.func @transform_2(%arg0: i32, %arg1: i32) -> (i32, i32) {
    %c0_i32 = arith.constant 0 : i32
    %c0_i32_0 = arith.constant 0 : i32
    %c0_i32_1 = arith.constant 0 : i32
    return %c0_i32, %c0_i32_0 : i32, i32
  }
  func.func @transform_3(%arg0: i32, %arg1: i32) -> (i32, i32) {
    %c0_i32 = arith.constant 0 : i32
    %c0_i32_0 = arith.constant 0 : i32
    %c0_i32_1 = arith.constant 0 : i32
    return %c0_i32, %c0_i32_0 : i32, i32
  }
  func.func @transform_4(%arg0: i32, %arg1: i32) -> (i32, i32) {
    %c0_i32 = arith.constant 0 : i32
    %c0_i32_0 = arith.constant 0 : i32
    %c0_i32_1 = arith.constant 0 : i32
    return %c0_i32, %c0_i32_0 : i32, i32
  }
  func.func @transform_5(%arg0: i32, %arg1: i32) -> (i32, i32, i32) {
    %c0_i32 = arith.constant 0 : i32
    %c0_i32_0 = arith.constant 0 : i32
    return %arg0, %c0_i32, %arg1 : i32, i32, i32
  }
}

</mosaic_0001>

<llo_original>
// kernel: tpu_custom_call.1
$region0: #{tpu_custom_call.1}
  #allocation0 [shape = 'u32[]', space=smem, size = 0x4, offset = 0x4, fixed_abs, tag = 'smem constant byte address 0x4 - core index']
  #allocation1 [shape = 'u32[72,128]{1,0:T(1,128)}', space=vmem, size = 0x9000, scoped, tag = 'internal scratch']
  %s0 = inlined_call_operand.vmem [shape: f32[2,4,16], index: 0, kind: input, shape index: {}]
  %s1 = inlined_call_operand.vmem [shape: f32[4,1], index: 1, kind: input, shape index: {}]
  %s2 = inlined_call_operand.vmem [shape: f32[4,1], index: 2, kind: input, shape index: {}]
  %s3 = inlined_call_operand.vmem [shape: f32[4,12], index: 3, kind: input, shape index: {}]
  %s4 = inlined_call_operand.vmem [shape: f32[4,1], index: 4, kind: input, shape index: {}]
  %s5 = inlined_call_operand.hbm [shape: f32[2,4,16], index: 5, kind: output, shape index: {}]
  %s6 = sld [smem:[#allocation0]]
  $region53: #{tpu_custom_call.1} parent=0
    _
  %s8 = ssub.s32 1, %s6
  %s9 = scalar_select 0, %s8, %s6
  $region1: #{tpu_custom_call.1} parent=0
    #allocation2 [shape = 'u8[4096]{0}', space=vmem, size = 0x1000, scoped, tag = 'output window, operand 0']
    #allocation3 [shape = 's32[2]{0}', space=sflag, size = 0x8, scoped, tag = 'scoped memory for tpu_custom_call.1']
    %10 = vsyncpa [#allocation3], 0
    %s11 = scalar_lea.sflag [#allocation3], 1
    %12 = vsyncpa %s11, 0
    loop: start=0, step=1, limit=4
    $region2: #{tpu_custom_call.1} parent=1 // loop_pre_header
      _
    $region3: #{tpu_custom_call.1} parent=1 // loop_header
      %s14 = sphi 0, %s18
      %p15 = scmp.ge.s32.totalorder %s14, 4
      %s21 = sphi 0, %s33
      %s22 = sphi 0, %s29
      %s23 = sphi 0, %s21
      %s24 = sphi 0, %s22
      %s25 = sphi 0, %s23
      %s26 = sphi 0, %s24
      %s36 = sphi 0, %s38
      %s39 = sphi 0, %s36
      %s40 = sphi 0, %s39
      %s56 = sphi 0, %s40
      %s60 = sphi 0, %s60
      %s62 = sphi 0, %s60
      %s63 = sphi 0, %s62
      %s77 = sphi 0, %s63
      %s81 = sphi 0, %s81
      %s83 = sphi 0, %s81
      %s84 = sphi 0, %s83
      %s98 = sphi 0, %s84
      %s102 = sphi 0, %s102
      %s104 = sphi 0, %s102
      %s105 = sphi 0, %s104
      %s119 = sphi 0, %s105
      %s123 = sphi 0, %s123
      %s125 = sphi 0, %s123
      %s126 = sphi 0, %s125
      %s140 = sphi 0, %s126
      %s148 = sphi 0, %s150
      %s151 = sphi 0, %s148
      %s152 = sphi 0, %s151
      %s168 = sphi 0, %s152
    $region4: #{tpu_custom_call.1} parent=1 // loop_header_branch
      %17 = sbr.rel (%p15) target = $region8
    $region5: #{tpu_custom_call.1} parent=1 // loop_body
      %s19 = ssub.s32 %s14, 1
      %s20 = ssub.s32 %s14, 2
      %s27 = sadd.s32 1, %s22
      %p28 = scmp.ge.s32.totalorder %s27, 1
      %s29 = scalar_select %p28, 0, %s27
      %s30 = sadd.s32 1, %s21
      %s31 = scalar_select %p28, %s30, %s21
      %p32 = scmp.ge.s32.totalorder %s31, 2
      %s33 = scalar_select %p32, 0, %s31
      %s34 = ssub.s32 %s21, %s33
      %p35 = scmp.eq.s32.totalorder %s34, 0
      %s37 = sadd.s32 %s36, 1
      %s38 = scalar_select %p35, %s36, %s37
      %p41 = pneg %p35
      %p42 = scmp.eq.s32.totalorder %s14, 1
      %p43 = por %p41, %p42
      %p44 = scmp.ne.s32.totalorder %s36, %s39
      %p45 = scmp.eq.s32.totalorder %s14, 0
      %p46 = por %p44, %p45
      %p47 = scmp.ne.s32.totalorder %s36, %s39
      %p48 = scmp.eq.s32.totalorder %s19, 1
      %p49 = por %p47, %p48
      %p50 = scmp.ne.s32.totalorder %s39, %s40
      %p51 = scmp.eq.s32.totalorder %s19, 0
      %p52 = por %p50, %p51
      %p53 = scmp.ne.s32.totalorder %s39, %s40
      %p54 = scmp.eq.s32.totalorder %s20, 1
      %p55 = por %p53, %p54
      %p57 = scmp.ne.s32.totalorder %s40, %s56
      %p58 = scmp.eq.s32.totalorder %s20, 0
      %p59 = por %p57, %p58
      %s61 = sadd.s32 %s60, 1
      %p64 = scmp.eq.s32.totalorder %s14, 1
      %p65 = scmp.ne.s32.totalorder %s60, %s62
      %p66 = scmp.eq.s32.totalorder %s14, 0
      %p67 = por %p65, %p66
      %p68 = scmp.ne.s32.totalorder %s60, %s62
      %p69 = scmp.eq.s32.totalorder %s19, 1
      %p70 = por %p68, %p69
      %p71 = scmp.ne.s32.totalorder %s62, %s63
      %p72 = scmp.eq.s32.totalorder %s19, 0
      %p73 = por %p71, %p72
      %p74 = scmp.ne.s32.totalorder %s62, %s63
      %p75 = scmp.eq.s32.totalorder %s20, 1
      %p76 = por %p74, %p75
      %p78 = scmp.ne.s32.totalorder %s63, %s77
      %p79 = scmp.eq.s32.totalorder %s20, 0
      %p80 = por %p78, %p79
      %s82 = sadd.s32 %s81, 1
      %p85 = scmp.eq.s32.totalorder %s14, 1
      %p86 = scmp.ne.s32.totalorder %s81, %s83
      %p87 = scmp.eq.s32.totalorder %s14, 0
      %p88 = por %p86, %p87
      %p89 = scmp.ne.s32.totalorder %s81, %s83
      %p90 = scmp.eq.s32.totalorder %s19, 1
      %p91 = por %p89, %p90
      %p92 = scmp.ne.s32.totalorder %s83, %s84
      %p93 = scmp.eq.s32.totalorder %s19, 0
      %p94 = por %p92, %p93
      %p95 = scmp.ne.s32.totalorder %s83, %s84
      %p96 = scmp.eq.s32.totalorder %s20, 1
      %p97 = por %p95, %p96
      %p99 = scmp.ne.s32.totalorder %s84, %s98
      %p100 = scmp.eq.s32.totalorder %s20, 0
      %p101 = por %p99, %p100
      %s103 = sadd.s32 %s102, 1
      %p106 = scmp.eq.s32.totalorder %s14, 1
      %p107 = scmp.ne.s32.totalorder %s102, %s104
      %p108 = scmp.eq.s32.totalorder %s14, 0
      %p109 = por %p107, %p108
      %p110 = scmp.ne.s32.totalorder %s102, %s104
      %p111 = scmp.eq.s32.totalorder %s19, 1
      %p112 = por %p110, %p111
      %p113 = scmp.ne.s32.totalorder %s104, %s105
      %p114 = scmp.eq.s32.totalorder %s19, 0
      %p115 = por %p113, %p114
      %p116 = scmp.ne.s32.totalorder %s104, %s105
      %p117 = scmp.eq.s32.totalorder %s20, 1
      %p118 = por %p116, %p117
      %p120 = scmp.ne.s32.totalorder %s105, %s119
      %p121 = scmp.eq.s32.totalorder %s20, 0
      %p122 = por %p120, %p121
      %s124 = sadd.s32 %s123, 1
      %p127 = scmp.eq.s32.totalorder %s14, 1
      %p128 = scmp.ne.s32.totalorder %s123, %s125
      %p129 = scmp.eq.s32.totalorder %s14, 0
      %p130 = por %p128, %p129
      %p131 = scmp.ne.s32.totalorder %s123, %s125
      %p132 = scmp.eq.s32.totalorder %s19, 1
      %p133 = por %p131, %p132
      %p134 = scmp.ne.s32.totalorder %s125, %s126
      %p135 = scmp.eq.s32.totalorder %s19, 0
      %p136 = por %p134, %p135
      %p137 = scmp.ne.s32.totalorder %s125, %s126
      %p138 = scmp.eq.s32.totalorder %s20, 1
      %p139 = por %p137, %p138
      %p141 = scmp.ne.s32.totalorder %s126, %s140
      %p142 = scmp.eq.s32.totalorder %s20, 0
      %p143 = por %p141, %p142
      %s144 = ssub.s32 %s21, %s33
      %s145 = ssub.s32 %s22, %s29
      %s146 = sor.u32 %s144, %s145
      %p147 = scmp.eq.s32.totalorder %s146, 0
      %s149 = sadd.s32 %s148, 1
      %s150 = scalar_select %p147, %s148, %s149
      %p153 = pneg %p147
      %p154 = scmp.eq.s32.totalorder %s14, 1
      %p155 = por %p153, %p154
      %p156 = scmp.ne.s32.totalorder %s148, %s151
      %p157 = scmp.eq.s32.totalorder %s14, 0
      %p158 = por %p156, %p157
      %p159 = scmp.ne.s32.totalorder %s148, %s151
      %p160 = scmp.eq.s32.totalorder %s19, 1
      %p161 = por %p159, %p160
      %p162 = scmp.ne.s32.totalorder %s151, %s152
      %p163 = scmp.eq.s32.totalorder %s19, 0
      %p164 = por %p162, %p163
      %p165 = scmp.ne.s32.totalorder %s151, %s152
      %p166 = scmp.eq.s32.totalorder %s20, 1
      %p167 = por %p165, %p166
      %p169 = scmp.ne.s32.totalorder %s152, %s168
      %p170 = scmp.eq.s32.totalorder %s20, 0
      %p171 = por %p169, %p170
      %p172 = scmp.le.s32.totalorder 1, %s14
      %p173 = scmp.lt.s32.totalorder %s14, 3
      %p174 = pnand %p172, %p173
      %p175 = pneg %p174
      // Predicated region
      $region9: #{tpu_custom_call.1} parent=5 // pred_check
        _
      $region10: #{tpu_custom_call.1} parent=5 // pred_check_branch
        %177 = sbr.rel (%p174) target = $region12
      $region11: #{tpu_custom_call.1} parent=5 // pred_region
        %s178 = ssub.s32 %s14, 1
        // Predicated region
        $region13: #{tpu_custom_call.1} parent=11 // pred_check
          %p179 = pneg %p73
        $region14: #{tpu_custom_call.1} parent=11 // pred_check_branch
          %181 = sbr.rel (%p179) target = $region16
        $region15: #{tpu_custom_call.1} parent=11 // pred_region
          _
        $region16: #{tpu_custom_call.1} parent=11 // pred_fallthru
          _
        // Predicated region
        $region17: #{tpu_custom_call.1} parent=11 // pred_check
          %p182 = pneg %p94
        $region18: #{tpu_custom_call.1} parent=11 // pred_check_branch
          %184 = sbr.rel (%p182) target = $region20
        $region19: #{tpu_custom_call.1} parent=11 // pred_region
          _
        $region20: #{tpu_custom_call.1} parent=11 // pred_fallthru
          _
        // Predicated region
        $region21: #{tpu_custom_call.1} parent=11 // pred_check
          %p185 = pneg %p115
        $region22: #{tpu_custom_call.1} parent=11 // pred_check_branch
          %187 = sbr.rel (%p185) target = $region24
        $region23: #{tpu_custom_call.1} parent=11 // pred_region
          _
        $region24: #{tpu_custom_call.1} parent=11 // pred_fallthru
          _
        // Predicated region
        $region25: #{tpu_custom_call.1} parent=11 // pred_check
          %p188 = pneg %p136
        $region26: #{tpu_custom_call.1} parent=11 // pred_check_branch
          %190 = sbr.rel (%p188) target = $region28
        $region27: #{tpu_custom_call.1} parent=11 // pred_region
          _
        $region28: #{tpu_custom_call.1} parent=11 // pred_fallthru
          _
      $region12: #{tpu_custom_call.1} parent=5 // pred_fallthru
        _
      %p191 = scmp.lt.s32.totalorder %s14, 2
      // Predicated region
      $region29: #{tpu_custom_call.1} parent=5 // pred_check
        %p192 = pneg %p191
      $region30: #{tpu_custom_call.1} parent=5 // pred_check_branch
        %194 = sbr.rel (%p192) target = $region32
      $region31: #{tpu_custom_call.1} parent=5 // pred_region
        // Predicated region
        $region33: #{tpu_custom_call.1} parent=31 // pred_check
          %p195 = pneg %p46
        $region34: #{tpu_custom_call.1} parent=31 // pred_check_branch
          %197 = sbr.rel (%p195) target = $region36
        $region35: #{tpu_custom_call.1} parent=31 // pred_region
          %p198 = scmp.lt.s32.totalorder %s21, 1
          %s199 = scalar_select %p198, %s21, 1
          %s200 = smul.addr %s199, 4
          %s201 = scalar_lea.vmem %s0, %s200
        $region36: #{tpu_custom_call.1} parent=31 // pred_fallthru
          _
      $region32: #{tpu_custom_call.1} parent=5 // pred_fallthru
        _
      %p202 = scmp.le.s32.totalorder 1, %s14
      %p203 = scmp.lt.s32.totalorder %s14, 3
      %p204 = pnand %p202, %p203
      %p205 = pneg %p204
      // Predicated region
      $region37: #{tpu_custom_call.1} parent=5 // pred_check
        _
      $region38: #{tpu_custom_call.1} parent=5 // pred_check_branch
        %207 = sbr.rel (%p204) target = $region40
      $region39: #{tpu_custom_call.1} parent=5 // pred_region
        %s208 = ssub.s32 %s14, 1
        %p209 = scmp.lt.s32.totalorder %s23, 1
        %s210 = scalar_select %p209, %s23, 1
        %s211 = smul.addr %s210, 4
        %s212 = scalar_lea.vmem %s0, %s211
        %p213 = pneg %p52
        %p214 = pneg %p49
        %p215 = pneg %p73
        %p216 = pneg %p70
        %p217 = pneg %p94
        %p218 = pneg %p91
        %p219 = pneg %p115
        %p220 = pneg %p112
        %p221 = pneg %p136
        %p222 = pneg %p133
        %p223 = pneg %p164
        %p224 = pneg %p161
        %s225 = sand.u32 %s151, 1
        %s226 = scalar_lea.sflag [#allocation3], %s225
        %s227 = sand.u32 %s151, 1
        %s228 = smul.addr %s227, 4
        %s229 = scalar_lea.vmem [#allocation2], %s228
        %p230 = scmp.lt.s32.totalorder %s23, 1
        %s231 = scalar_select %p230, %s23, 1
        %s232 = smul.addr %s231, 4
        %s233 = scalar_lea.vmem %s0, %s232
        %v234 = vld [vmem:[%s233] sm:$0xf]
        %v235 = vld [vmem:[%s1] sm:$0xf]
        %237 = vset.pattern.permute.xlu0 0
        %238 = vperm.xlu0 %237, %v235
        %v239 = vpop.permute.xlu0 %238
        %v241 = vmul.f32 %v234, %v239
        %v242 = vld [vmem:[%s2] sm:$0xf]
        %244 = vset.pattern.permute.xlu0 0
        %245 = vperm.xlu0 %244, %v242
        %v246 = vpop.permute.xlu0 %245
        %v248 = vadd.f32 %v241, %v246
        %v249 = vmax.f32 %v248, 0.0
        %251 = vrot.lane.b32.xlu0 %v249, 1
        %v252 = vpop.permute.xlu0 %251
        %vm254 = vcmask 7168
        %v255 = vsel %vm254, 0.0, %v252
        %vm256 = vcmask 138240
        %v257 = vsel %vm256, %v255, 0.0
        %v259 = vrot.slane %v257, 4
        %260 = vrot.lane.b32.xlu0 %v259, 127
        %v261 = vpop.permute.xlu0 %260
        %263 = vrot.lane.b32.xlu0 %v257, 126
        %v264 = vpop.permute.xlu0 %263
        %vm265 = vcmask 1043456
        %v266 = vsel %vm265, %v257, %v261
        %v267 = vld [vmem:[%s3] sm:$0xf]
        %v268 = vld [vmem:[%s4] sm:$0xf]
        %270 = vset.pattern.permute.xlu0 0
        %271 = vperm.xlu0 %270, %v268
        %v272 = vpop.permute.xlu0 %271
        %vm274 = vcmask 97280
        %v276 = vsel %vm274, %v267, 0
        %v278 = vsel %vm265, %v264, 0
        %280 = vmatpush.msra.mxu0 0.0
        %281 = vmatpush.msra.mxu0 0.0
        %282 = vmatpush.msra.mxu0 0.0
        %283 = vmatpush.msra.mxu0 0.0
        %284 = vmatpush.msra.mxu0 0.0
        %285 = vmatpush.msra.mxu0 0.0
        %286 = vmatpush.msra.mxu0 0.0
        %287 = vmatpush.msra.mxu0 0.0
        %288 = vmatpush.msra.mxu0 0.0
        %289 = vmatpush.msra.mxu0 0.0
        %290 = vmatpush.msra.mxu0 0.0
        %291 = vmatpush.msra.mxu0 0.0
        %292 = vmatpush.msra.mxu0 0.0
        %293 = vmatpush.msra.mxu0 0.0
        %294 = vmatpush.msra.mxu0 %v278
        %295 = vmatpush.msra.mxu0 %v266
        %296 = vmatmul.f32.gmra.mxu0 %v276
        %v297 = vpop.f32.mrf.mxu0
        %v298 = vadd.f32 %v272, %v297
        %299 = vdwg.mxu0
        %vm300 = vcmask 125952
        %301 = vst.msk [vmem:[%s229] sm:$0xf] %vm300, %v298
        %s302 = sand.u32 %s151, 1
        %s303 = scalar_lea.sflag [#allocation3], %s302
        %s304 = sand.u32 %s151, 1
        %s305 = smul.addr %s304, 4
        %s306 = scalar_lea.vmem [#allocation2], %s305
        // Predicated region
        $region41: #{tpu_custom_call.1} parent=39 // pred_check
          %p307 = pneg %p161
        $region42: #{tpu_custom_call.1} parent=39 // pred_check_branch
          %309 = sbr.rel (%p307) target = $region44
        $region43: #{tpu_custom_call.1} parent=39 // pred_region
          %311 = vsyncadd %s303, 0
          %s312 = sadd.s32 %s24, %s23
          %s313 = smul.addr %s312, 4
          %s314 = scalar_lea.hbm %s5, %s313
          %s316 = sshll.u32 %s306, 4
          %s317 = int_to_ptr.vmem [resolvable:$true] %s316
          %s318 = sshll.u32 %s314, 4
          %s319 = int_to_ptr.hbm [resolvable:$true] %s318
          %321 = dma.vmem_to_hbm [thread:$0]  %s317, 64, %s319, %s303
        $region44: #{tpu_custom_call.1} parent=39 // pred_fallthru
          _
      $region40: #{tpu_custom_call.1} parent=5 // pred_fallthru
        _
      %p322 = scmp.le.s32.totalorder 2, %s14
      // Predicated region
      $region45: #{tpu_custom_call.1} parent=5 // pred_check
        %p323 = pneg %p322
      $region46: #{tpu_custom_call.1} parent=5 // pred_check_branch
        %325 = sbr.rel (%p323) target = $region48
      $region47: #{tpu_custom_call.1} parent=5 // pred_region
        %s326 = ssub.s32 %s14, 2
        // Predicated region
        $region49: #{tpu_custom_call.1} parent=47 // pred_check
          %p327 = pneg %p167
        $region50: #{tpu_custom_call.1} parent=47 // pred_check_branch
          %329 = sbr.rel (%p327) target = $region52
        $region51: #{tpu_custom_call.1} parent=47 // pred_region
          %s330 = sand.u32 %s152, 1
          %s331 = scalar_lea.sflag [#allocation3], %s330
          %s332 = sand.u32 %s152, 1
          %s333 = smul.addr %s332, 4
          %s334 = scalar_lea.vmem [#allocation2], %s333
          %336 = dma.done %s331, 64
        $region52: #{tpu_custom_call.1} parent=47 // pred_fallthru
          _
      $region48: #{tpu_custom_call.1} parent=5 // pred_fallthru
        _
    $region6: #{tpu_custom_call.1} parent=1 // loop_footer
      %s18 = sadd.s32 1, %s14
    $region7: #{tpu_custom_call.1} parent=1 // loop_footer_branch
      %13 = sbr.rel target = $region3
    $region8: #{tpu_custom_call.1} parent=1 // loop_exit
      _
    %337 = vsyncpa [#allocation3], 1
    %s338 = scalar_lea.sflag [#allocation3], 1
    %339 = vsyncpa %s338, 1

</llo_original>
